<compile_context>
chip_gen: v5e
topology: v5e:2x2
jax: 0.10.0
libtpu: 0.0.40
codegen_flags: <defaults>
</compile_context>

<pallas_src>
import functools

import jax
import jax.numpy as jnp
from jax.experimental import pallas as pl
from jax.experimental.pallas import tpu as pltpu


def _conv3x3_kernel(x_ref, w_ref, b_ref, o_ref, *, img_rows):
    """3x3 conv over a block of image rows as ONE banded matmul + XLU row shifts.

    x_ref : (R, W*Cin)        bf16 rows (R = images_per_block * img_rows)
    w_ref : (W*Cin, 3*W*Cout) bf16 banded weights, the three kh taps
                              concatenated along the output axis (kw taps and
                              width zero-padding folded into the bands)
    b_ref : (1, W*Cout)       f32 bias tiled across W
    o_ref : (R, W*Cout)       bf16, lane-dense (W*Cout multiple of 128 here)
    """
    x = x_ref[...]                                   # (R, W*Cin) bf16
    n_rows = x.shape[0]
    n_out = o_ref.shape[-1]                          # W*Cout

    # Single MXU contraction: M=R, K=W*Cin, N=3*W*Cout, f32 accumulation.
    y = jnp.dot(x, w_ref[...], preferred_element_type=jnp.float32)

    # Lane-aligned 128-wide panels, one per kernel row kh.
    y0 = y[:, 0 * n_out:1 * n_out]                   # kh = 0 (reads row h-1)
    y1 = y[:, 1 * n_out:2 * n_out]                   # kh = 1 (reads row h)
    y2 = y[:, 2 * n_out:3 * n_out]                   # kh = 2 (reads row h+1)

    # Height taps: shift panels along the sublane (row) axis with XLU rolls and
    # zero the first/last row of EVERY image (height zero-padding; this also
    # stops cross-image bleed when several images share one block).
    # pltpu.roll requires a non-negative shift, so "up by one" is n_rows - 1.
    row = jax.lax.broadcasted_iota(jnp.int32, y1.shape, 0) % img_rows
    y0s = jnp.where(row == 0, 0.0, pltpu.roll(y0, shift=1, axis=0))
    y2s = jnp.where(row == img_rows - 1, 0.0,
                    pltpu.roll(y2, shift=n_rows - 1, axis=0))

    acc = y1 + y0s + y2s + b_ref[...]                # bias broadcasts over rows
    o_ref[...] = acc.astype(o_ref.dtype)


def _build_banded_weights(weight_oihw, W):
    """Fold kw taps + width zero-padding into three (W*Cin, W*Cout) matrices and
    concatenate them along the output axis -> (W*Cin, 3*W*Cout) bf16.

    W_kh[w_in*Cin + ci, w_out*Cout + co] = weight[co, ci, kh, w_in - w_out + 1]
    (zero when |w_in - w_out| > 1, which implements the width padding).
    """
    Cout, Cin, _, _ = weight_oihw.shape
    w_hwio = jnp.transpose(weight_oihw, (2, 3, 1, 0)).astype(jnp.float32)  # (3,3,Cin,Cout)
    mats = []
    for kh in range(3):
        acc = jnp.zeros((W, Cin, W, Cout), jnp.float32)
        for kw in range(3):
            band = jnp.eye(W, k=1 - kw, dtype=jnp.float32)   # band[w_in, w_out]
            acc = acc + jnp.einsum('ab,io->aibo', band, w_hwio[kh, kw])
        mats.append(acc.reshape(W * Cin, W * Cout))
    return jnp.concatenate(mats, axis=1).astype(jnp.bfloat16)


def _default_num_row_blocks(n_images):
    """v7x has 2 TensorCores per chip -> prefer >=2 parallel grid steps there;
    single-TC v5e/v6e prefer the fewest grid steps (largest M per MXU push)."""
    try:
        kind = jax.devices()[0].device_kind.lower()
    except Exception:  # pragma: no cover - device query should not be fatal
        kind = ""
    if ("v7" in kind or "7x" in kind) and n_images % 2 == 0:
        return 2
    return 1


def conv2dl_rows(x_rows, weight_oihw, bias, *, img_rows,
                 out_dtype=jnp.bfloat16, num_blocks=None):
    """Conv2DL forward on rows-layout activations.

    x_rows: (N*H, W*Cin) bf16 image rows, channels minor -- the layout the full
            VidCnn stack keeps between layers (no NCHW glue on this path).
    returns (N*H, W*Cout) in out_dtype (bf16 by default, f32 accumulation).
    """
    total_rows, WC_in = x_rows.shape
    Cout, Cin = weight_oihw.shape[0], weight_oihw.shape[1]
    W = WC_in // Cin
    WC_out = W * Cout

    n_images = total_rows // img_rows
    if num_blocks is None:
        num_blocks = _default_num_row_blocks(n_images)
    assert total_rows % (num_blocks * img_rows) == 0, "blocks must hold whole images"
    rows_per_block = total_rows // num_blocks

    w_cat = _build_banded_weights(weight_oihw, W)             # (WC_in, 3*WC_out)
    b_tiled = jnp.tile(bias.astype(jnp.float32), W).reshape(1, WC_out)

    return pl.pallas_call(
        functools.partial(_conv3x3_kernel, img_rows=img_rows),
        out_shape=jax.ShapeDtypeStruct((total_rows, WC_out), out_dtype),
        grid_spec=pltpu.PrefetchScalarGridSpec(
            num_scalar_prefetch=0,
            grid=(num_blocks,),
            in_specs=[
                pl.BlockSpec((rows_per_block, WC_in), lambda i: (i, 0)),
                pl.BlockSpec((WC_in, 3 * WC_out), lambda i: (0, 0)),
                pl.BlockSpec((1, WC_out), lambda i: (0, 0)),
            ],
            out_specs=pl.BlockSpec((rows_per_block, WC_out), lambda i: (i, 0)),
        ),
        compiler_params=pltpu.CompilerParams(
            dimension_semantics=("parallel",),
            vmem_limit_bytes=32 * 1024 * 1024,
        ),
    )(x_rows, w_cat, b_tiled)


def conv2dl_forward(x_nchw, weight_oihw, bias, out_dtype=jnp.bfloat16):
    """PyTorch-convention boundary shim (demo / reference check only).

    In the full VidCnn stack activations stay in the (rows, W*C) bf16 layout
    between layers; the transposes below are NOT part of the kernel path.
    """
    N, Cin, H, W = x_nchw.shape
    Cout = weight_oihw.shape[0]
    x_rows = jnp.transpose(x_nchw, (0, 2, 3, 1)).reshape(N * H, W * Cin)
    x_rows = x_rows.astype(jnp.bfloat16)
    out_rows = conv2dl_rows(x_rows, weight_oihw, bias, img_rows=H,
                            out_dtype=out_dtype)
    out_nhwc = out_rows.reshape(N, H, W, Cout)
    return jnp.transpose(out_nhwc, (0, 3, 1, 2))


def _reference_conv(x_nchw, weight_oihw, bias):
    out = jax.lax.conv_general_dilated(
        x_nchw, weight_oihw,
        window_strides=(1, 1), padding=((1, 1), (1, 1)),
        dimension_numbers=("NCHW", "OIHW", "NCHW"),
    )
    return out + bias.reshape(1, -1, 1, 1)


if __name__ == "__main__":
    key = jax.random.PRNGKey(0)
    N, Cin, Cout, H, W = 2, 4, 8, 16, 16   # W*Cout = 128 -> lane-dense output

    kx, kwt, kb = jax.random.split(key, 3)
    x = jax.random.normal(kx, (N, Cin, H, W), dtype=jnp.float32)
    fan_in = Cin * 3 * 3
    bound = 1.0 / (fan_in ** 0.5)
    weight = jax.random.uniform(kwt, (Cout, Cin, 3, 3), jnp.float32, -bound, bound)
    bias = jax.random.uniform(kb, (Cout,), jnp.float32, -bound, bound)

    out = conv2dl_forward(x, weight, bias)
    out = jax.block_until_ready(out)

    # Reference from bf16-quantized operands to match the kernel's bf16 x bf16
    # -> f32 MXU path; the kernel writes bf16, so the tolerance also covers one
    # output ulp.
    x_q = x.astype(jnp.bfloat16).astype(jnp.float32)
    w_q = weight.astype(jnp.bfloat16).astype(jnp.float32)
    ref = _reference_conv(x_q, w_q, bias)

    assert out.shape == (N, Cout, H, W)
    assert out.dtype == jnp.bfloat16
    assert jnp.allclose(out.astype(jnp.float32), ref, atol=2e-2, rtol=2e-2), \
        "mismatch vs reference conv"

    print("KERNEL_OK")
</pallas_src>

<mosaic_0001>
module attributes {stable_mosaic.version = 11 : i64} {
  func.func @_conv3x3_kernel(%arg0: i32, %arg1: memref<32x64xbf16, #tpu.memory_space<vmem>>, %arg2: memref<64x384xbf16, #tpu.memory_space<vmem>>, %arg3: memref<1x128xf32, #tpu.memory_space<vmem>>, %arg4: memref<32x128xbf16, #tpu.memory_space<vmem>>) attributes {dimension_semantics = [#tpu.dimension_semantics<parallel>], iteration_bounds = array<i64: 1>, scalar_prefetch = 0 : i64, scratch_operands = 0 : i64, tpu.core_type = #tpu.core_type<tc>, window_params = [{transform_indices = @transform_0, window_bounds = array<i64: 32, 64>}, {pipeline_mode = #tpu.pipeline_mode<synchronous>, transform_indices = @transform_1, window_bounds = array<i64: 64, 384>}, {pipeline_mode = #tpu.pipeline_mode<synchronous>, transform_indices = @transform_2, window_bounds = array<i64: 1, 128>}, {transform_indices = @transform_3, window_bounds = array<i64: 32, 128>}]} {
    %c0 = arith.constant 0 : index
    %c0_0 = arith.constant 0 : index
    %0 = vector.load %arg1[%c0, %c0_0] : memref<32x64xbf16, #tpu.memory_space<vmem>>, vector<32x64xbf16>
    %c0_1 = arith.constant 0 : index
    %c0_2 = arith.constant 0 : index
    %1 = vector.load %arg2[%c0_1, %c0_2] : memref<64x384xbf16, #tpu.memory_space<vmem>>, vector<64x384xbf16>
    %cst = arith.constant dense<0.000000e+00> : vector<32x384xf32>
    %2 = tpu.matmul %0, %1, %cst {dimension_numbers = #tpu.dot_dimension_numbers<[1], [0], [0], [1], [0, 0, 1, 1], [], []>} : vector<32x64xbf16>, vector<64x384xbf16>, vector<32x384xf32> -> vector<32x384xf32>
    %3 = vector.extract_strided_slice %2 {offsets = [0, 0], sizes = [32, 128], strides = [1, 1]} : vector<32x384xf32> to vector<32x128xf32>
    %4 = vector.extract_strided_slice %2 {offsets = [0, 128], sizes = [32, 128], strides = [1, 1]} : vector<32x384xf32> to vector<32x128xf32>
    %5 = vector.extract_strided_slice %2 {offsets = [0, 256], sizes = [32, 128], strides = [1, 1]} : vector<32x384xf32> to vector<32x128xf32>
    %6 = tpu.iota {dimensions = array<i32: 0>} : vector<32x128xi32>
    %c16_i32 = arith.constant 16 : i32
    %c0_i32 = arith.constant 0 : i32
    %7 = arith.cmpi eq, %c16_i32, %c0_i32 : i32
    %c1_i32 = arith.constant 1 : i32
    %8 = arith.select %7, %c1_i32, %c16_i32 : i32
    %9 = vector.broadcast %8 : i32 to vector<32x128xi32>
    %10 = arith.remsi %6, %9 : vector<32x128xi32>
    %c0_i32_3 = arith.constant 0 : i32
    %11 = vector.broadcast %c0_i32_3 : i32 to vector<32x128xi32>
    %12 = arith.cmpi ne, %10, %11 : vector<32x128xi32>
    %c0_i32_4 = arith.constant 0 : i32
    %13 = vector.broadcast %c0_i32_4 : i32 to vector<32x128xi32>
    %14 = arith.cmpi slt, %10, %13 : vector<32x128xi32>
    %c0_i32_5 = arith.constant 0 : i32
    %15 = arith.cmpi slt, %8, %c0_i32_5 : i32
    %16 = vector.broadcast %15 : i1 to vector<32x128xi1>
    %17 = vector.broadcast %16 : vector<32x128xi1> to vector<32x128xi1>
    %18 = arith.xori %14, %17 : vector<32x128xi1>
    %19 = arith.andi %18, %12 : vector<32x128xi1>
    %20 = vector.broadcast %8 : i32 to vector<32x128xi32>
    %21 = arith.addi %10, %20 : vector<32x128xi32>
    %22 = arith.select %19, %21, %10 : vector<32x128xi1>, vector<32x128xi32>
    %c0_i32_6 = arith.constant 0 : i32
    %23 = vector.broadcast %c0_i32_6 : i32 to vector<32x128xi32>
    %24 = arith.cmpi eq, %22, %23 : vector<32x128xi32>
    %c1_i32_7 = arith.constant 1 : i32
    %25 = tpu.dynamic_rotate %3 by %c1_i32_7 dim 0 : vector<32x128xf32>, i32 -> vector<32x128xf32>
    %cst_8 = arith.constant 0.000000e+00 : f32
    %26 = vector.broadcast %cst_8 : f32 to vector<32x128xf32>
    %27 = arith.select %24, %26, %25 : vector<32x128xi1>, vector<32x128xf32>
    %c15_i32 = arith.constant 15 : i32
    %28 = vector.broadcast %c15_i32 : i32 to vector<32x128xi32>
    %29 = arith.cmpi eq, %22, %28 : vector<32x128xi32>
    %c31_i32 = arith.constant 31 : i32
    %30 = tpu.dynamic_rotate %5 by %c31_i32 dim 0 : vector<32x128xf32>, i32 -> vector<32x128xf32>
    %cst_9 = arith.constant 0.000000e+00 : f32
    %31 = vector.broadcast %cst_9 : f32 to vector<32x128xf32>
    %32 = arith.select %29, %31, %30 : vector<32x128xi1>, vector<32x128xf32>
    %33 = arith.addf %4, %27 : vector<32x128xf32>
    %34 = arith.addf %33, %32 : vector<32x128xf32>
    %c0_10 = arith.constant 0 : index
    %c0_11 = arith.constant 0 : index
    %35 = vector.load %arg3[%c0_10, %c0_11] : memref<1x128xf32, #tpu.memory_space<vmem>>, vector<1x128xf32>
    %36 = vector.broadcast %35 : vector<1x128xf32> to vector<32x128xf32>
    %37 = arith.addf %34, %36 : vector<32x128xf32>
    %38 = arith.truncf %37 : vector<32x128xf32> to vector<32x128xbf16>
    %c0_12 = arith.constant 0 : index
    %c0_13 = arith.constant 0 : index
    %39 = vector.load %arg4[%c0_12, %c0_13] : memref<32x128xbf16, #tpu.memory_space<vmem>>, vector<32x128xbf16>
    tpu.vector_store %arg4[%c0_12, %c0_13], %38 {strides = array<i32>} : memref<32x128xbf16, #tpu.memory_space<vmem>>, vector<32x128xbf16>,
    return
  }
  func.func @transform_0(%arg0: i32) -> (i32, i32) {
    %c0_i32 = arith.constant 0 : i32
    %c0_i32_0 = arith.constant 0 : i32
    return %arg0, %c0_i32 : i32, i32
  }
  func.func @transform_1(%arg0: i32) -> (i32, i32) {
    %c0_i32 = arith.constant 0 : i32
    %c0_i32_0 = arith.constant 0 : i32
    %c0_i32_1 = arith.constant 0 : i32
    return %c0_i32, %c0_i32_0 : i32, i32
  }
  func.func @transform_2(%arg0: i32) -> (i32, i32) {
    %c0_i32 = arith.constant 0 : i32
    %c0_i32_0 = arith.constant 0 : i32
    %c0_i32_1 = arith.constant 0 : i32
    return %c0_i32, %c0_i32_0 : i32, i32
  }
  func.func @transform_3(%arg0: i32) -> (i32, i32) {
    %c0_i32 = arith.constant 0 : i32
    %c0_i32_0 = arith.constant 0 : i32
    return %arg0, %c0_i32 : i32, i32
  }
}

</mosaic_0001>

<llo_original>
// kernel: tpu_custom_call.1
$region0: #{tpu_custom_call.1}
  #allocation0 [shape = 'u32[]', space=smem, size = 0x4, offset = 0x4, fixed_abs, tag = 'smem constant byte address 0x4 - core index']
  #allocation1 [shape = 'u32[72,128]{1,0:T(1,128)}', space=vmem, size = 0x9000, scoped, tag = 'internal scratch']
  %s0 = inlined_call_operand.hbm [shape: bf16[32,64], index: 0, kind: input, shape index: {}]
  %s1 = inlined_call_operand.hbm [shape: bf16[64,384], index: 1, kind: input, shape index: {}]
  %s2 = inlined_call_operand.vmem [shape: f32[1,128], index: 2, kind: input, shape index: {}]
  %s3 = inlined_call_operand.hbm [shape: bf16[32,128], index: 3, kind: output, shape index: {}]
  %s4 = sld [smem:[#allocation0]]
  $region30: #{tpu_custom_call.1} parent=0
    _
  %s6 = ssub.s32 1, %s4
  %s7 = scalar_select 0, %s6, %s4
  $region1: #{tpu_custom_call.1} parent=0
    #allocation2 [shape = 'u8[8192]{0}', space=vmem, size = 0x2000, scoped, tag = 'input window, operand 0, single buffered']
    #allocation3 [shape = 's32[1]{0}', space=sflag, size = 0x4, scoped, tag = 'scoped memory for tpu_custom_call.1']
    #allocation4 [shape = 's32[1]{0}', space=sflag, size = 0x4, scoped, tag = 'scoped memory for tpu_custom_call.1']
    #allocation5 [shape = 'u8[49152]{0}', space=vmem, size = 0xc000, scoped, tag = 'input window, operand 1, single buffered']
    #allocation6 [shape = 's32[1]{0}', space=sflag, size = 0x4, scoped, tag = 'scoped memory for tpu_custom_call.1']
    #allocation7 [shape = 'u8[8192]{0}', space=vmem, size = 0x2000, scoped, tag = 'output window, operand 0, single buffered']
    %8 = vsyncpa [#allocation3], 0
    %9 = vsyncpa [#allocation6], 0
    %10 = vsyncpa [#allocation4], 0
    // Predicated region
    $region2: #{tpu_custom_call.1} parent=1 // pred_check
      _
    $region3: #{tpu_custom_call.1} parent=1 // pred_check_branch
      %12 = sbr.rel (0) target = $region5
    $region4: #{tpu_custom_call.1} parent=1 // pred_region
      %14 = vsyncadd [#allocation3], 0
      %s15 = sshll.u32 %s0, 4
      %s16 = int_to_ptr.hbm [resolvable:$true] %s15
      %s17 = sshll.u32 [#allocation2], 4
      %s18 = int_to_ptr.vmem [resolvable:$true] %s17
      %23 = dma.hbm_to_vmem [thread:$0]  %s16, 256, %s18, [#allocation3], 64, 64, 4
    $region5: #{tpu_custom_call.1} parent=1 // pred_fallthru
      _
    // Predicated region
    $region6: #{tpu_custom_call.1} parent=1 // pred_check
      _
    $region7: #{tpu_custom_call.1} parent=1 // pred_check_branch
      %25 = sbr.rel (0) target = $region9
    $region8: #{tpu_custom_call.1} parent=1 // pred_region
      %27 = vsyncadd [#allocation6], 0
      %s28 = sshll.u32 %s1, 4
      %s29 = int_to_ptr.hbm [resolvable:$true] %s28
      %s30 = sshll.u32 [#allocation5], 4
      %s31 = int_to_ptr.vmem [resolvable:$true] %s30
      %36 = dma.hbm_to_vmem [thread:$0]  %s29, 1536, %s31, [#allocation6], 192, 192, 12
    $region9: #{tpu_custom_call.1} parent=1 // pred_fallthru
      _
    // Predicated region
    $region10: #{tpu_custom_call.1} parent=1 // pred_check
      _
    $region11: #{tpu_custom_call.1} parent=1 // pred_check_branch
      %38 = sbr.rel (0) target = $region13
    $region12: #{tpu_custom_call.1} parent=1 // pred_region
      _
    $region13: #{tpu_custom_call.1} parent=1 // pred_fallthru
      _
    // Predicated region
    $region14: #{tpu_custom_call.1} parent=1 // pred_check
      _
    $region15: #{tpu_custom_call.1} parent=1 // pred_check_branch
      %40 = sbr.rel (0) target = $region17
    $region16: #{tpu_custom_call.1} parent=1 // pred_region
      %42 = dma.done [#allocation3], 256
    $region17: #{tpu_custom_call.1} parent=1 // pred_fallthru
      _
    // Predicated region
    $region18: #{tpu_custom_call.1} parent=1 // pred_check
      _
    $region19: #{tpu_custom_call.1} parent=1 // pred_check_branch
      %44 = sbr.rel (0) target = $region21
    $region20: #{tpu_custom_call.1} parent=1 // pred_region
      %46 = dma.done [#allocation6], 1536
    $region21: #{tpu_custom_call.1} parent=1 // pred_fallthru
      _
    %v48 = vld [vmem:[#allocation2] sm:$0xf]
    %v49 = vld [vmem:[#allocation2 + $0x4] sm:$0xf]
    %v50 = vld [vmem:[#allocation2 + $0x8] sm:$0xf]
    %v51 = vld [vmem:[#allocation2 + $0xc] sm:$0xf]
    %v52 = vld [vmem:[#allocation5] sm:$0xff]
    %v53 = vld [vmem:[#allocation5 + $0x8] sm:$0xf]
    %v54 = vld [vmem:[#allocation5 + $0xc] sm:$0xff]
    %v55 = vld [vmem:[#allocation5 + $0x14] sm:$0xf]
    %v56 = vld [vmem:[#allocation5 + $0x18] sm:$0xff]
    %v57 = vld [vmem:[#allocation5 + $0x20] sm:$0xf]
    %v58 = vld [vmem:[#allocation5 + $0x24] sm:$0xff]
    %v59 = vld [vmem:[#allocation5 + $0x2c] sm:$0xf]
    %v60 = vld [vmem:[#allocation5 + $0x30] sm:$0xff]
    %v61 = vld [vmem:[#allocation5 + $0x38] sm:$0xf]
    %v62 = vld [vmem:[#allocation5 + $0x3c] sm:$0xff]
    %v63 = vld [vmem:[#allocation5 + $0x44] sm:$0xf]
    %v64 = vld [vmem:[#allocation5 + $0x48] sm:$0xff]
    %v65 = vld [vmem:[#allocation5 + $0x50] sm:$0xf]
    %v66 = vld [vmem:[#allocation5 + $0x54] sm:$0xff]
    %v67 = vld [vmem:[#allocation5 + $0x5c] sm:$0xf]
    %v72 = vunpack.c.l.b16 %v48
    %v73 = vunpack.c.l.b16 %v49
    %v74 = vunpack.c.l.b16 %v50
    %v75 = vunpack.c.l.b16 %v51
    %v76 = vpack.c.b16 %v73, %v72
    %v77 = vpack.c.b16 %v75, %v74
    %v94 = vunpack.c.l.b16 %v52
    %v95 = vunpack.c.h.b16 %v52
    %v96 = vunpack.c.l.b16 %v53
    %v97 = vunpack.c.l.b16 %v54
    %v98 = vunpack.c.h.b16 %v54
    %v99 = vunpack.c.l.b16 %v55
    %v100 = vunpack.c.l.b16 %v56
    %v101 = vunpack.c.h.b16 %v56
    %v102 = vunpack.c.l.b16 %v57
    %v103 = vunpack.c.l.b16 %v58
    %v104 = vunpack.c.h.b16 %v58
    %v105 = vunpack.c.l.b16 %v59
    %v106 = vunpack.c.l.b16 %v60
    %v107 = vunpack.c.h.b16 %v60
    %v108 = vunpack.c.l.b16 %v61
    %v109 = vunpack.c.l.b16 %v62
    %v110 = vunpack.c.h.b16 %v62
    %v111 = vunpack.c.l.b16 %v63
    %v112 = vunpack.c.l.b16 %v64
    %v113 = vunpack.c.h.b16 %v64
    %v114 = vunpack.c.l.b16 %v65
    %v115 = vunpack.c.l.b16 %v66
    %v116 = vunpack.c.h.b16 %v66
    %v117 = vunpack.c.l.b16 %v67
    %v118 = vpack.c.b16 %v97, %v94
    %v119 = vpack.c.b16 %v98, %v95
    %v120 = vpack.c.b16 %v99, %v96
    %v121 = vpack.c.b16 %v103, %v100
    %v122 = vpack.c.b16 %v104, %v101
    %v123 = vpack.c.b16 %v105, %v102
    %v124 = vpack.c.b16 %v109, %v106
    %v125 = vpack.c.b16 %v110, %v107
    %v126 = vpack.c.b16 %v111, %v108
    %v127 = vpack.c.b16 %v115, %v112
    %v128 = vpack.c.b16 %v116, %v113
    %v129 = vpack.c.b16 %v117, %v114
    %vm142 = vcmask 523264
    %v144 = vsel %vm142, %v76, 0
    %v147 = vsel %vm142, %v77, 0
    %149 = vmatpush.bf16.msra.mxu0 0
    %150 = vmatpush.bf16.msra.mxu0 0
    %151 = vmatpush.bf16.msra.mxu0 0
    %152 = vmatpush.bf16.msra.mxu0 0
    %153 = vmatpush.bf16.msra.mxu0 %v127
    %154 = vmatpush.bf16.msra.mxu0 %v124
    %155 = vmatpush.bf16.msra.mxu0 %v121
    %156 = vmatpush.bf16.msra.mxu0 %v118
    %157 = vmatmul.bf16.gmra.mxu0 %v144
    %v158 = vpop.f32.mrf.mxu0
    %v159 = vadd.f32 0.0, %v158
    %v160 = vpop.f32.mrf.mxu0
    %v161 = vadd.f32 0.0, %v160
    %162 = vmatmul.bf16.gmra.mxu0 %v147
    %v163 = vpop.f32.mrf.mxu0
    %v164 = vadd.f32 0.0, %v163
    %v165 = vpop.f32.mrf.mxu0
    %v166 = vadd.f32 0.0, %v165
    %167 = vdwg.mxu0
    %168 = vmatpush.bf16.msra.mxu0 0
    %169 = vmatpush.bf16.msra.mxu0 0
    %170 = vmatpush.bf16.msra.mxu0 0
    %171 = vmatpush.bf16.msra.mxu0 0
    %172 = vmatpush.bf16.msra.mxu0 %v128
    %173 = vmatpush.bf16.msra.mxu0 %v125
    %174 = vmatpush.bf16.msra.mxu0 %v122
    %175 = vmatpush.bf16.msra.mxu0 %v119
    %176 = vmatmul.bf16.gmra.mxu0 %v144
    %v177 = vpop.f32.mrf.mxu0
    %v178 = vadd.f32 0.0, %v177
    %v179 = vpop.f32.mrf.mxu0
    %v180 = vadd.f32 0.0, %v179
    %181 = vmatmul.bf16.gmra.mxu0 %v147
    %v182 = vpop.f32.mrf.mxu0
    %v183 = vadd.f32 0.0, %v182
    %v184 = vpop.f32.mrf.mxu0
    %v185 = vadd.f32 0.0, %v184
    %186 = vdwg.mxu0
    %187 = vmatpush.bf16.msra.mxu0 0
    %188 = vmatpush.bf16.msra.mxu0 0
    %189 = vmatpush.bf16.msra.mxu0 0
    %190 = vmatpush.bf16.msra.mxu0 0
    %191 = vmatpush.bf16.msra.mxu0 %v129
    %192 = vmatpush.bf16.msra.mxu0 %v126
    %193 = vmatpush.bf16.msra.mxu0 %v123
    %194 = vmatpush.bf16.msra.mxu0 %v120
    %195 = vmatmul.bf16.gmra.mxu0 %v144
    %v196 = vpop.f32.mrf.mxu0
    %v197 = vadd.f32 0.0, %v196
    %v198 = vpop.f32.mrf.mxu0
    %v199 = vadd.f32 0.0, %v198
    %200 = vmatmul.bf16.gmra.mxu0 %v147
    %v201 = vpop.f32.mrf.mxu0
    %v202 = vadd.f32 0.0, %v201
    %v203 = vpop.f32.mrf.mxu0
    %v204 = vadd.f32 0.0, %v203
    %205 = vdwg.mxu0
    %v206 = vlaneseq
    %v207 = vshrl.u32 %v206, 7
    %v208 = vadd.s32 %v207, 8
    %v209 = vadd.s32 %v207, 16
    %v210 = vadd.s32 %v207, 24
    %vm211 = vcmp.lt.s32.totalorder %v207, 0
    %v212 = vsub.s32 0, %v207
    %v213 = vsel %vm211, %v212, %v207
    %v214 = vshrl.u32 %v213, 4
    %v215 = vand.u32 %v213, 15
    %v216 = vsub.s32 0, %v215
    %v217 = vsel %vm211, %v216, %v215
    %vm218 = vcmp.lt.s32.totalorder %v208, 0
    %v219 = vsub.s32 0, %v208
    %v220 = vsel %vm218, %v219, %v208
    %v221 = vshrl.u32 %v220, 4
    %v222 = vand.u32 %v220, 15
    %v223 = vsub.s32 0, %v222
    %v224 = vsel %vm218, %v223, %v222
    %vm225 = vcmp.lt.s32.totalorder %v209, 0
    %v226 = vsub.s32 0, %v209
    %v227 = vsel %vm225, %v226, %v209
    %v228 = vshrl.u32 %v227, 4
    %v229 = vand.u32 %v227, 15
    %v230 = vsub.s32 0, %v229
    %v231 = vsel %vm225, %v230, %v229
    %vm232 = vcmp.lt.s32.totalorder %v210, 0
    %v233 = vsub.s32 0, %v210
    %v234 = vsel %vm232, %v233, %v210
    %v235 = vshrl.u32 %v234, 4
    %v236 = vand.u32 %v234, 15
    %v237 = vsub.s32 0, %v236
    %v238 = vsel %vm232, %v237, %v236
    %vm239 = vcmp.ne.s32.totalorder %v217, 0
    %vm240 = vcmp.ne.s32.totalorder %v224, 0
    %vm241 = vcmp.ne.s32.totalorder %v231, 0
    %vm242 = vcmp.ne.s32.totalorder %v238, 0
    %vm243 = vcmp.lt.s32.totalorder %v217, 0
    %vm244 = vcmp.lt.s32.totalorder %v224, 0
    %vm245 = vcmp.lt.s32.totalorder %v231, 0
    %vm246 = vcmp.lt.s32.totalorder %v238, 0
    %vm247 = vmand %vm243, %vm239
    %vm248 = vmand %vm244, %vm240
    %vm249 = vmand %vm245, %vm241
    %vm250 = vmand %vm246, %vm242
    %v251 = vadd.s32 %v217, 16
    %v252 = vadd.s32 %v224, 16
    %v253 = vadd.s32 %v231, 16
    %v254 = vadd.s32 %v238, 16
    %v255 = vsel %vm247, %v251, %v217
    %v256 = vsel %vm248, %v252, %v224
    %v257 = vsel %vm249, %v253, %v231
    %v258 = vsel %vm250, %v254, %v238
    %vm259 = vcmp.eq.s32.totalorder %v255, 0
    %vm260 = vcmp.eq.s32.totalorder %v256, 0
    %vm261 = vcmp.eq.s32.totalorder %v257, 0
    %vm262 = vcmp.eq.s32.totalorder %v258, 0
    %v263 = vrot.slane %v159, 7
    %v264 = vrot.slane %v161, 7
    %v265 = vrot.slane %v164, 7
    %v266 = vrot.slane %v166, 7
    %vm267 = vcmp.lt.s32.totalorder %v207, 1
    %v268 = vsel %vm267, %v265, %v266
    %v269 = vsel %vm267, %v264, %v265
    %v270 = vsel %vm267, %v263, %v264
    %v271 = vsel %vm267, %v266, %v263
    %v272 = vsel %vm259, 0.0, %v271
    %v273 = vsel %vm260, 0.0, %v270
    %v274 = vsel %vm261, 0.0, %v269
    %v275 = vsel %vm262, 0.0, %v268
    %vm276 = vcmp.eq.s32.totalorder %v255, 15
    %vm277 = vcmp.eq.s32.totalorder %v256, 15
    %vm278 = vcmp.eq.s32.totalorder %v257, 15
    %vm279 = vcmp.eq.s32.totalorder %v258, 15
    %v280 = vrot.slane %v197, 1
    %v281 = vrot.slane %v199, 1
    %v282 = vrot.slane %v202, 1
    %v283 = vrot.slane %v204, 1
    %vm284 = vcmp.lt.s32.totalorder %v207, 7
    %v285 = vsel %vm284, %v282, %v283
    %v286 = vsel %vm284, %v281, %v282
    %v287 = vsel %vm284, %v280, %v281
    %v288 = vsel %vm284, %v283, %v280
    %v289 = vsel %vm276, 0.0, %v287
    %v290 = vsel %vm277, 0.0, %v286
    %v291 = vsel %vm278, 0.0, %v285
    %v292 = vsel %vm279, 0.0, %v288
    %v293 = vadd.f32 %v178, %v272
    %v294 = vadd.f32 %v180, %v273
    %v295 = vadd.f32 %v183, %v274
    %v296 = vadd.f32 %v185, %v275
    %v297 = vadd.f32 %v293, %v289
    %v298 = vadd.f32 %v294, %v290
    %v299 = vadd.f32 %v295, %v291
    %v300 = vadd.f32 %v296, %v292
    %v301 = vld [vmem:[%s2] sm:$0x1]
    %v303 = vperm.slane %v301, 0
    %v305 = vadd.f32 %v297, %v303
    %v306 = vadd.f32 %v298, %v303
    %v307 = vadd.f32 %v299, %v303
    %v308 = vadd.f32 %v300, %v303
    %v309 = vpack.c.bf16 %v305, %v305
    %v310 = vpack.c.bf16 %v306, %v306
    %v311 = vpack.c.bf16 %v307, %v307
    %v312 = vpack.c.bf16 %v308, %v308
    %313 = vst [vmem:[#allocation7] sm:$0xf] %v309
    %314 = vst [vmem:[#allocation7 + $0x4] sm:$0xf] %v310
    %315 = vst [vmem:[#allocation7 + $0x8] sm:$0xf] %v311
    %316 = vst [vmem:[#allocation7 + $0xc] sm:$0xf] %v312
    // Predicated region
    $region22: #{tpu_custom_call.1} parent=1 // pred_check
      _
    $region23: #{tpu_custom_call.1} parent=1 // pred_check_branch
      %318 = sbr.rel (0) target = $region25
    $region24: #{tpu_custom_call.1} parent=1 // pred_region
      %320 = vsyncadd [#allocation4], 0
      %s321 = sshll.u32 [#allocation7], 4
      %s322 = int_to_ptr.vmem [resolvable:$true] %s321
      %s323 = sshll.u32 %s3, 4
      %s324 = int_to_ptr.hbm [resolvable:$true] %s323
      %329 = dma.vmem_to_hbm [thread:$0]  %s322, 256, %s324, [#allocation4], 64, 64, 4
    $region25: #{tpu_custom_call.1} parent=1 // pred_fallthru
      _
    // Predicated region
    $region26: #{tpu_custom_call.1} parent=1 // pred_check
      _
    $region27: #{tpu_custom_call.1} parent=1 // pred_check_branch
      %331 = sbr.rel (0) target = $region29
    $region28: #{tpu_custom_call.1} parent=1 // pred_region
      %333 = dma.done [#allocation4], 256
    $region29: #{tpu_custom_call.1} parent=1 // pred_fallthru
      _
    %334 = vsyncpa [#allocation3], 1
    %335 = vsyncpa [#allocation6], 1
    %336 = vsyncpa [#allocation4], 1

</llo_original>
